<compile_context>
chip_gen: v6e
topology: v6e:2x2x1
jax: 0.10.0
libtpu: 0.0.40
codegen_flags: <defaults>
</compile_context>

<pallas_src>
import jax
import jax.numpy as jnp
from jax.experimental import pallas as pl
from jax.experimental.pallas import tpu as pltpu
import numpy as np

EPSILON = 1e-10
NEG_INF = -1e30                      # bias for padded (fake) classes -> exp() == 0
HIDDEN_BUDGET_BYTES = 24 << 20       # hidden double-buffer budget (safe on v7x's 64 MiB)


def _vmem_limit_bytes():
    """~3/4 of physical VMEM: 48 MiB on v7x (64 MiB/TC), 96 MiB on v5e/v6e."""
    cap = 64 << 20
    try:
        cap = int(getattr(pltpu.get_tpu_info(), "vmem_capacity_bytes", cap))
    except Exception:
        pass
    return max(48 << 20, min(cap * 3 // 4, 96 << 20))


def _divisors_desc(n, cap):
    cap = max(1, min(cap, n))
    return [d for d in range(cap, 0, -1) if n % d == 0]


def _choose_tiles(B, S, E, hidden_itemsize):
    """Pick (TB, TS) for streaming the (B, S, E) hidden tensor.

    TS: divisor of S that is a multiple of 128 (it is the lane dim of the mask
        block), else S itself (full-dim escape).
    TB: any divisor of B (always a leading block dim), preferring >= 2 batch
        blocks so the "parallel" axis shards across v7x's two TensorCores.
    Largest (TS, TB) whose double-buffered hidden block fits the VMEM budget.
    """
    ts_cands = [d for d in _divisors_desc(S, 512) if d % 128 == 0] or [S]
    tb_cands = ([d for d in _divisors_desc(B, 32) if d <= B // 2]
                or _divisors_desc(B, 32))
    for ts in ts_cands:
        for tb in tb_cands:
            if 2 * tb * ts * E * hidden_itemsize <= HIDDEN_BUDGET_BYTES:
                return tb, ts
    # Pathological shapes (huge S with no 128-divisor): smallest candidates.
    return tb_cands[-1], ts_cands[-1]


def discriminator_forward(x_ids, hidden, w, b):
    """Fused masked mean-pool + classification head + log_softmax.

    x_ids : (B, S) int token ids, 0 == padding
    hidden: (B, S, E) encoder hidden states (streamed through VMEM as bf16)
    w, b  : (E, C), (C,) classifier head parameters
    returns (B, C) log-probabilities (float32)
    """
    B, S, E = hidden.shape
    Ew, C = w.shape
    assert Ew == E and x_ids.shape == (B, S)

    # HBM-bandwidth-bound kernel: stream the big tensor as bf16.
    hidden = hidden.astype(jnp.bfloat16)

    # Classifier padded to lane-dense CP (multiple of 128); padded classes get
    # bias -1e30 so they contribute exp(.) == 0 to the softmax normalizer.
    CP = pl.cdiv(C, 128) * 128
    w_pad = jnp.zeros((E, CP), jnp.float32).at[:, :C].set(w.astype(jnp.float32))
    b_pad = jnp.full((1, CP), NEG_INF, jnp.float32).at[0, :C].set(
        b.astype(jnp.float32))

    TB, TS = _choose_tiles(B, S, E, 2)
    nb, ns = B // TB, S // TS

    # Tiny bf16 padding mask laid out (B, 1, S): per-block mask is (TB, 1, TS)
    # with TS on lanes (replaces the 128x lane-padded int32 ids stream).
    valid = x_ids != 0
    mask_b1s = valid.astype(jnp.bfloat16).reshape(B, 1, S)

    # Per-batch-tile index of the last sequence block containing a real token,
    # scalar-prefetched into SMEM; fully-padded blocks are skipped & not DMA'd.
    pos1 = jnp.arange(1, S + 1, dtype=jnp.int32)
    row_end = jnp.max(jnp.where(valid, pos1[None, :], 0), axis=1)       # (B,)
    blk_end = jnp.max(row_end.reshape(nb, TB), axis=1)                  # (nb,)
    blk_last = jnp.maximum((blk_end + TS - 1) // TS - 1, 0).astype(jnp.int32)

    def kernel(lastblk_ref, mask_ref, hidden_ref, w_ref, b_ref, out_ref,
               sum_acc, cnt_acc):
        # lastblk_ref: (nb,)        int32  SMEM (scalar prefetch)
        # mask_ref   : (TB, 1, TS)  bf16   padding mask (1.0 = real token)
        # hidden_ref : (TB, TS, E)  bf16   encoder hidden states (current block)
        # w_ref      : (E, CP)      f32    classifier weight (resident)
        # b_ref      : (1, CP)      f32    classifier bias   (resident)
        # out_ref    : (TB, 1, CP)  f32    log-probabilities
        # sum_acc    : (TB, 1, E)   f32    running masked sum over S
        # cnt_acc    : (TB, 1, 1)   f32    running mask count over S
        i = pl.program_id(0)
        s = pl.program_id(1)

        @pl.when(s == 0)
        def _init():
            sum_acc[...] = jnp.zeros_like(sum_acc)
            cnt_acc[...] = jnp.zeros_like(cnt_acc)

        # Skip sequence blocks that are entirely padding for this batch tile.
        @pl.when(s <= lastblk_ref[i])
        def _accumulate():
            m = mask_ref[...]                                   # (TB, 1, TS) bf16
            h = hidden_ref[...]                                 # (TB, TS, E) bf16
            # Masked sequence reduction on the MXU (flash-attention einsum
            # pattern); bf16 x bf16 products accumulate in f32.
            sum_acc[...] += jnp.einsum("bot,bte->boe", m, h,
                                       preferred_element_type=jnp.float32)
            cnt_acc[...] += jnp.sum(m.astype(jnp.float32), axis=2, keepdims=True)

        @pl.when(s == pl.num_programs(1) - 1)
        def _finalize():
            pooled = jnp.sum(sum_acc[...], axis=1)              # (TB, E)
            cnt = jnp.sum(cnt_acc[...], axis=1)                 # (TB, 1)
            inv = pl.reciprocal(cnt + EPSILON)                  # (TB, 1)
            # Divide AFTER the matmul: only (TB, CP) values get scaled.
            logits = jnp.dot(pooled, w_ref[...],
                             preferred_element_type=jnp.float32) * inv + b_ref[...]
            mx = jnp.max(logits, axis=-1, keepdims=True)
            z = logits - mx
            lse = jnp.log(jnp.sum(jnp.exp(z), axis=-1, keepdims=True))
            out_ref[:, 0, :] = z - lse

    out3 = pl.pallas_call(
        kernel,
        out_shape=jax.ShapeDtypeStruct((B, 1, CP), jnp.float32),
        grid_spec=pltpu.PrefetchScalarGridSpec(
            num_scalar_prefetch=1,
            grid=(nb, ns),
            in_specs=[
                # mask: clamp S block index so skipped blocks are not re-DMA'd
                pl.BlockSpec((TB, 1, TS),
                             lambda i, s, lb: (i, 0, jnp.minimum(s, lb[i]))),
                # hidden: same clamping
                pl.BlockSpec((TB, TS, E),
                             lambda i, s, lb: (i, jnp.minimum(s, lb[i]), 0)),
                pl.BlockSpec((E, CP), lambda i, s, lb: (0, 0)),   # W resident
                pl.BlockSpec((1, CP), lambda i, s, lb: (0, 0)),   # b resident
            ],
            out_specs=pl.BlockSpec((TB, 1, CP), lambda i, s, lb: (i, 0, 0)),
            scratch_shapes=[
                pltpu.VMEM((TB, 1, E), jnp.float32),   # masked-sum accumulator
                pltpu.VMEM((TB, 1, 1), jnp.float32),   # mask-count accumulator
            ],
        ),
        compiler_params=pltpu.CompilerParams(
            dimension_semantics=("parallel", "arbitrary"),
            vmem_limit_bytes=_vmem_limit_bytes(),
        ),
    )(blk_last, mask_b1s, hidden, w_pad, b_pad)

    return out3[:, 0, :C]


def standin_encoder(x_ids, wte, wpe):
    """Deterministic stand-in for GPT-2: token + position embedding (bf16 out)."""
    B, S = x_ids.shape
    pos = jnp.arange(S)
    h = wte[x_ids] + wpe[pos][None, :, :]           # (B, S, E) f32
    return h.astype(jnp.bfloat16)                   # bf16 at the kernel boundary


def reference_forward(x_ids, hidden, w, b):
    mask = (x_ids != 0).astype(jnp.float32)[:, :, None]
    h = hidden.astype(jnp.float32)
    avg = jnp.sum(h * mask, axis=1) / (jnp.sum(mask, axis=1) + EPSILON)
    logits = avg @ w + b
    return jax.nn.log_softmax(logits, axis=-1)


if __name__ == "__main__":
    # Small, deterministic shapes consistent with the module's forward:
    B, S, E, C, VOCAB = 2, 8, 32, 5, 50   # batch, seq, embed_size, class_size, vocab

    key = jax.random.PRNGKey(0)
    k_ids, k_wte, k_wpe, k_w, k_b = jax.random.split(key, 5)

    # Token ids; force some padding (0) tokens so the mask matters.
    x_ids = jax.random.randint(k_ids, (B, S), 1, VOCAB, dtype=jnp.int32)
    x_ids = x_ids.at[0, 5:].set(0)
    x_ids = x_ids.at[1, 7:].set(0)

    # Deterministic synthetic parameters (no checkpoint load).
    wte = 0.02 * jax.random.normal(k_wte, (VOCAB, E), dtype=jnp.float32)
    wpe = 0.02 * jax.random.normal(k_wpe, (S, E), dtype=jnp.float32)
    w_cls = 0.1 * jax.random.normal(k_w, (E, C), dtype=jnp.float32)   # ClassificationHead weight
    b_cls = 0.1 * jax.random.normal(k_b, (C,), dtype=jnp.float32)     # ClassificationHead bias

    hidden = standin_encoder(x_ids, wte, wpe)                         # (B, S, E) bf16

    log_probs = discriminator_forward(x_ids, hidden, w_cls, b_cls)
    log_probs = jax.block_until_ready(log_probs)

    ref = reference_forward(x_ids, hidden, w_cls, b_cls)
    assert log_probs.shape == (B, C)
    assert np.allclose(np.asarray(log_probs), np.asarray(ref),
                       atol=1e-5, rtol=1e-4)

    print("KERNEL_OK")
</pallas_src>

<mosaic_0001>
module attributes {stable_mosaic.version = 11 : i64} {
  func.func @kernel(%arg0: i32, %arg1: i32, %arg2: memref<2xi32, #tpu.memory_space<smem>>, %arg3: memref<1x1x8xbf16, #tpu.memory_space<vmem>>, %arg4: memref<1x8x32xbf16, #tpu.memory_space<vmem>>, %arg5: memref<32x128xf32, #tpu.memory_space<vmem>>, %arg6: memref<1x128xf32, #tpu.memory_space<vmem>>, %arg7: memref<1x1x128xf32, #tpu.memory_space<vmem>>, %arg8: memref<1x1x32xf32, #tpu.memory_space<vmem>>, %arg9: memref<1x1x1xf32, #tpu.memory_space<vmem>>) attributes {dimension_semantics = [#tpu.dimension_semantics<parallel>, #tpu.dimension_semantics<arbitrary>], iteration_bounds = array<i64: 2, 1>, scalar_prefetch = 1 : i64, scratch_operands = 2 : i64, tpu.core_type = #tpu.core_type<tc>, window_params = [{transform_indices = @transform_0, window_bounds = array<i64: 1, 1, 8>}, {transform_indices = @transform_1, window_bounds = array<i64: 1, 8, 32>}, {pipeline_mode = #tpu.pipeline_mode<synchronous>, transform_indices = @transform_2, window_bounds = array<i64: 32, 128>}, {pipeline_mode = #tpu.pipeline_mode<synchronous>, transform_indices = @transform_3, window_bounds = array<i64: 1, 128>}, {transform_indices = @transform_4, window_bounds = array<i64: 1, 1, 128>}]} {
    %c0_i32 = arith.constant 0 : i32
    %0 = arith.cmpi eq, %arg1, %c0_i32 : i32
    %1 = arith.extui %0 : i1 to i32
    %c0_i32_0 = arith.constant 0 : i32
    %2 = arith.cmpi ne, %1, %c0_i32_0 : i32
    scf.if %2 {
      %cst = arith.constant 0.000000e+00 : f32
      %11 = vector.broadcast %cst : f32 to vector<1x1x32xf32>
      %c0 = arith.constant 0 : index
      %c0_4 = arith.constant 0 : index
      %c0_5 = arith.constant 0 : index
      %12 = vector.load %arg8[%c0, %c0_4, %c0_5] : memref<1x1x32xf32, #tpu.memory_space<vmem>>, vector<1x1x32xf32>
      tpu.vector_store %arg8[%c0, %c0_4, %c0_5], %11 {strides = array<i32>} : memref<1x1x32xf32, #tpu.memory_space<vmem>>, vector<1x1x32xf32>,
      %cst_6 = arith.constant 0.000000e+00 : f32
      %13 = vector.broadcast %cst_6 : f32 to vector<1x1x1xf32>
      %c0_7 = arith.constant 0 : index
      %c0_8 = arith.constant 0 : index
      %c0_9 = arith.constant 0 : index
      %14 = vector.load %arg9[%c0_7, %c0_8, %c0_9] : memref<1x1x1xf32, #tpu.memory_space<vmem>>, vector<1x1x1xf32>
      tpu.vector_store %arg9[%c0_7, %c0_8, %c0_9], %13 {strides = array<i32>} : memref<1x1x1xf32, #tpu.memory_space<vmem>>, vector<1x1x1xf32>,
    } else {
    }
    %3 = arith.index_cast %arg0 : i32 to index
    %4 = memref.load %arg2[%3] : memref<2xi32, #tpu.memory_space<smem>>
    %5 = arith.cmpi sle, %arg1, %4 : i32
    %6 = arith.extui %5 : i1 to i32
    %c0_i32_1 = arith.constant 0 : i32
    %7 = arith.cmpi ne, %6, %c0_i32_1 : i32
    scf.if %7 {
      %c0 = arith.constant 0 : index
      %c0_4 = arith.constant 0 : index
      %c0_5 = arith.constant 0 : index
      %11 = vector.load %arg3[%c0, %c0_4, %c0_5] : memref<1x1x8xbf16, #tpu.memory_space<vmem>>, vector<1x1x8xbf16>
      %c0_6 = arith.constant 0 : index
      %c0_7 = arith.constant 0 : index
      %c0_8 = arith.constant 0 : index
      %12 = vector.load %arg4[%c0_6, %c0_7, %c0_8] : memref<1x8x32xbf16, #tpu.memory_space<vmem>>, vector<1x8x32xbf16>
      %c0_9 = arith.constant 0 : index
      %c0_10 = arith.constant 0 : index
      %c0_11 = arith.constant 0 : index
      %13 = vector.load %arg8[%c0_9, %c0_10, %c0_11] : memref<1x1x32xf32, #tpu.memory_space<vmem>>, vector<1x1x32xf32>
      "tpu.trace_start"() <{level = 10 : i32, message = "bot,bte->boe"}> : () -> ()
      %cst = arith.constant dense<0.000000e+00> : vector<1x1x32xf32>
      %14 = tpu.matmul %11, %12, %cst {dimension_numbers = #tpu.dot_dimension_numbers<[2], [1], [1], [2], [0, 0, 0, 1, 1, 2], [0], [0]>} : vector<1x1x8xbf16>, vector<1x8x32xbf16>, vector<1x1x32xf32> -> vector<1x1x32xf32>
      "tpu.trace_stop"() : () -> ()
      %15 = arith.addf %13, %14 : vector<1x1x32xf32>
      %c0_12 = arith.constant 0 : index
      %c0_13 = arith.constant 0 : index
      %c0_14 = arith.constant 0 : index
      %16 = vector.load %arg8[%c0_12, %c0_13, %c0_14] : memref<1x1x32xf32, #tpu.memory_space<vmem>>, vector<1x1x32xf32>
      tpu.vector_store %arg8[%c0_12, %c0_13, %c0_14], %15 {strides = array<i32>} : memref<1x1x32xf32, #tpu.memory_space<vmem>>, vector<1x1x32xf32>,
      %c0_15 = arith.constant 0 : index
      %c0_16 = arith.constant 0 : index
      %c0_17 = arith.constant 0 : index
      %17 = vector.load %arg9[%c0_15, %c0_16, %c0_17] : memref<1x1x1xf32, #tpu.memory_space<vmem>>, vector<1x1x1xf32>
      %18 = arith.extf %11 : vector<1x1x8xbf16> to vector<1x1x8xf32>
      %cst_18 = arith.constant dense<0.000000e+00> : vector<1x1xf32>
      %19 = vector.multi_reduction <add>, %18, %cst_18 [2] : vector<1x1x8xf32> to vector<1x1xf32>
      %20 = vector.shape_cast %19 : vector<1x1xf32> to vector<1x1x1xf32>
      %21 = arith.addf %17, %20 : vector<1x1x1xf32>
      %c0_19 = arith.constant 0 : index
      %c0_20 = arith.constant 0 : index
      %c0_21 = arith.constant 0 : index
      %22 = vector.load %arg9[%c0_19, %c0_20, %c0_21] : memref<1x1x1xf32, #tpu.memory_space<vmem>>, vector<1x1x1xf32>
      tpu.vector_store %arg9[%c0_19, %c0_20, %c0_21], %21 {strides = array<i32>} : memref<1x1x1xf32, #tpu.memory_space<vmem>>, vector<1x1x1xf32>,
    } else {
    }
    %c0_i32_2 = arith.constant 0 : i32
    %8 = arith.cmpi eq, %arg1, %c0_i32_2 : i32
    %9 = arith.extui %8 : i1 to i32
    %c0_i32_3 = arith.constant 0 : i32
    %10 = arith.cmpi ne, %9, %c0_i32_3 : i32
    scf.if %10 {
      %c0 = arith.constant 0 : index
      %c0_4 = arith.constant 0 : index
      %c0_5 = arith.constant 0 : index
      %11 = vector.load %arg8[%c0, %c0_4, %c0_5] : memref<1x1x32xf32, #tpu.memory_space<vmem>>, vector<1x1x32xf32>
      %cst = arith.constant dense<0.000000e+00> : vector<1x32xf32>
      %12 = vector.multi_reduction <add>, %11, %cst [1] : vector<1x1x32xf32> to vector<1x32xf32>
      %c0_6 = arith.constant 0 : index
      %c0_7 = arith.constant 0 : index
      %c0_8 = arith.constant 0 : index
      %13 = vector.load %arg9[%c0_6, %c0_7, %c0_8] : memref<1x1x1xf32, #tpu.memory_space<vmem>>, vector<1x1x1xf32>
      %cst_9 = arith.constant dense<0.000000e+00> : vector<1x1xf32>
      %14 = vector.multi_reduction <add>, %13, %cst_9 [1] : vector<1x1x1xf32> to vector<1x1xf32>
      %cst_10 = arith.constant 1.000000e-10 : f32
      %15 = vector.broadcast %cst_10 : f32 to vector<1x1xf32>
      %16 = arith.addf %14, %15 : vector<1x1xf32>
      %17 = tpu.reciprocal %16 : vector<1x1xf32> -> vector<1x1xf32>
      %c0_11 = arith.constant 0 : index
      %c0_12 = arith.constant 0 : index
      %18 = vector.load %arg5[%c0_11, %c0_12] : memref<32x128xf32, #tpu.memory_space<vmem>>, vector<32x128xf32>
      %cst_13 = arith.constant dense<0.000000e+00> : vector<1x128xf32>
      %19 = tpu.matmul %12, %18, %cst_13 {dimension_numbers = #tpu.dot_dimension_numbers<[1], [0], [0], [1], [0, 0, 1, 1], [], []>} : vector<1x32xf32>, vector<32x128xf32>, vector<1x128xf32> -> vector<1x128xf32>
      %20 = vector.broadcast %17 : vector<1x1xf32> to vector<1x128xf32>
      %21 = arith.mulf %19, %20 : vector<1x128xf32>
      %c0_14 = arith.constant 0 : index
      %c0_15 = arith.constant 0 : index
      %22 = vector.load %arg6[%c0_14, %c0_15] : memref<1x128xf32, #tpu.memory_space<vmem>>, vector<1x128xf32>
      %23 = arith.addf %21, %22 : vector<1x128xf32>
      %cst_16 = arith.constant dense<0xFF800000> : vector<1xf32>
      %24 = vector.multi_reduction <maximumf>, %23, %cst_16 [1] : vector<1x128xf32> to vector<1xf32>
      %25 = vector.shape_cast %24 : vector<1xf32> to vector<1x1xf32>
      %26 = vector.broadcast %25 : vector<1x1xf32> to vector<1x128xf32>
      %27 = arith.subf %23, %26 : vector<1x128xf32>
      %28 = math.exp %27 : vector<1x128xf32>
      %cst_17 = arith.constant dense<0.000000e+00> : vector<1xf32>
      %29 = vector.multi_reduction <add>, %28, %cst_17 [1] : vector<1x128xf32> to vector<1xf32>
      %30 = vector.shape_cast %29 : vector<1xf32> to vector<1x1xf32>
      %31 = math.log %30 : vector<1x1xf32>
      %32 = vector.broadcast %31 : vector<1x1xf32> to vector<1x128xf32>
      %33 = arith.subf %27, %32 : vector<1x128xf32>
      %c0_18 = arith.constant 0 : index
      %c0_19 = arith.constant 0 : index
      %c0_20 = arith.constant 0 : index
      %34 = vector.load %arg7[%c0_18, %c0_19, %c0_20] : memref<1x1x128xf32, #tpu.memory_space<vmem>>, vector<1x1x128xf32>
      %35 = vector.shape_cast %34 : vector<1x1x128xf32> to vector<1x128xf32>
      %36 = vector.shape_cast %33 : vector<1x128xf32> to vector<1x1x128xf32>
      tpu.vector_store %arg7[%c0_18, %c0_19, %c0_20], %36 {strides = array<i32>} : memref<1x1x128xf32, #tpu.memory_space<vmem>>, vector<1x1x128xf32>,
    } else {
    }
    return
  }
  func.func @transform_0(%arg0: i32, %arg1: i32, %arg2: memref<2xi32, #tpu.memory_space<smem>>) -> (i32, i32, i32) {
    %0 = arith.index_cast %arg0 : i32 to index
    %1 = memref.load %arg2[%0] : memref<2xi32, #tpu.memory_space<smem>>
    %2 = arith.minsi %arg1, %1 : i32
    %c0_i32 = arith.constant 0 : i32
    %c0_i32_0 = arith.constant 0 : i32
    return %arg0, %c0_i32, %2 : i32, i32, i32
  }
  func.func @transform_1(%arg0: i32, %arg1: i32, %arg2: memref<2xi32, #tpu.memory_space<smem>>) -> (i32, i32, i32) {
    %0 = arith.index_cast %arg0 : i32 to index
    %1 = memref.load %arg2[%0] : memref<2xi32, #tpu.memory_space<smem>>
    %2 = arith.minsi %arg1, %1 : i32
    %c0_i32 = arith.constant 0 : i32
    %c0_i32_0 = arith.constant 0 : i32
    return %arg0, %2, %c0_i32 : i32, i32, i32
  }
  func.func @transform_2(%arg0: i32, %arg1: i32, %arg2: memref<2xi32, #tpu.memory_space<smem>>) -> (i32, i32) {
    %c0_i32 = arith.constant 0 : i32
    %c0_i32_0 = arith.constant 0 : i32
    %c0_i32_1 = arith.constant 0 : i32
    return %c0_i32, %c0_i32_0 : i32, i32
  }
  func.func @transform_3(%arg0: i32, %arg1: i32, %arg2: memref<2xi32, #tpu.memory_space<smem>>) -> (i32, i32) {
    %c0_i32 = arith.constant 0 : i32
    %c0_i32_0 = arith.constant 0 : i32
    %c0_i32_1 = arith.constant 0 : i32
    return %c0_i32, %c0_i32_0 : i32, i32
  }
  func.func @transform_4(%arg0: i32, %arg1: i32, %arg2: memref<2xi32, #tpu.memory_space<smem>>) -> (i32, i32, i32) {
    %c0_i32 = arith.constant 0 : i32
    %c0_i32_0 = arith.constant 0 : i32
    %c0_i32_1 = arith.constant 0 : i32
    return %arg0, %c0_i32, %c0_i32_0 : i32, i32, i32
  }
}

</mosaic_0001>

<llo_original>
// kernel: tpu_custom_call.1
$region0: #{tpu_custom_call.1}
  #allocation0 [shape = 'u32[]', space=smem, size = 0x4, offset = 0x4, fixed_abs, tag = 'smem constant byte address 0x4 - core index']
  #allocation1 [shape = 'u32[144,128]{1,0:T(1,128)}', space=vmem, size = 0x12000, scoped, tag = 'internal scratch']
  #allocation2 [shape = 'f32[1,1,32]{2,1,0:T(1,128)}', space=vmem, size = 0x200, scoped, tag = 'scratch operand']
  #allocation3 [shape = 'f32[1,1,1]{2,1,0:T(1,128)}', space=vmem, size = 0x200, scoped, tag = 'scratch operand']
  #allocation4 [shape = 's32[1]{0}', space=sflag, size = 0x4, scoped, tag = 'scoped memory for tpu_custom_call.1']
  #allocation5 [shape = 'u8[512]{0}', space=smem, size = 0x200, scoped, tag = 'prefetched SMEM operand 0']
  %s0 = inlined_call_operand.vmem [shape: s32[2], index: 0, kind: input, shape index: {}]
  %s1 = inlined_call_operand.vmem [shape: bf16[2,1,8], index: 1, kind: input, shape index: {}]
  %s2 = inlined_call_operand.hbm [shape: bf16[2,8,32], index: 2, kind: input, shape index: {}]
  %s3 = inlined_call_operand.hbm [shape: f32[32,128], index: 3, kind: input, shape index: {}]
  %s4 = inlined_call_operand.vmem [shape: f32[1,128], index: 4, kind: input, shape index: {}]
  %s5 = inlined_call_operand.hbm [shape: f32[2,1,128], index: 5, kind: output, shape index: {}]
  %s6 = sld [smem:[#allocation0]]
  $region69: #{tpu_custom_call.1} parent=0
    _
  %s8 = ssub.s32 1, %s6
  %s9 = scalar_select 0, %s8, %s6
  %s10 = sshll.u32 %s0, 4
  %s11 = int_to_ptr.vmem [resolvable:$true] %s10
  %13 = dma.vmem_to_smem %s11, 16, [#allocation5], [#allocation4]
  %14 = dma.done [#allocation4], 16
  %15 = sfence
  $region1: #{tpu_custom_call.1} parent=0
    #allocation6 [shape = 'u8[4096]{0}', space=vmem, size = 0x1000, scoped, tag = 'input window, operand 2']
    #allocation7 [shape = 's32[2]{0}', space=sflag, size = 0x8, scoped, tag = 'scoped memory for tpu_custom_call.1']
    #allocation8 [shape = 's32[2]{0}', space=sflag, size = 0x8, scoped, tag = 'scoped memory for tpu_custom_call.1']
    #allocation9 [shape = 'u8[16384]{0}', space=vmem, size = 0x4000, scoped, tag = 'input window, operand 3, single buffered']
    #allocation10 [shape = 's32[1]{0}', space=sflag, size = 0x4, scoped, tag = 'scoped memory for tpu_custom_call.1']
    #allocation11 [shape = 'u8[1024]{0}', space=vmem, size = 0x400, scoped, tag = 'output window, operand 0']
    %16 = vsyncpa [#allocation7], 0
    %s17 = scalar_lea.sflag [#allocation7], 1
    %18 = vsyncpa %s17, 0
    %19 = vsyncpa [#allocation10], 0
    %20 = vsyncpa [#allocation8], 0
    %s21 = scalar_lea.sflag [#allocation8], 1
    %22 = vsyncpa %s21, 0
    loop: start=0, step=1, limit=4
    $region2: #{tpu_custom_call.1} parent=1 // loop_pre_header
      _
    $region3: #{tpu_custom_call.1} parent=1 // loop_header
      %s24 = sphi 0, %s28
      %p25 = scmp.ge.s32.totalorder %s24, 4
      %s31 = sphi 0, %s43
      %s32 = sphi 0, %s39
      %s33 = sphi 0, %s31
      %s34 = sphi 0, %s32
      %s35 = sphi 0, %s33
      %s36 = sphi 0, %s34
      %s54 = sphi 0, %s56
      %s57 = sphi 0, %s54
      %s58 = sphi 0, %s57
      %s74 = sphi 0, %s58
      %s88 = sphi 0, %s90
      %s91 = sphi 0, %s88
      %s92 = sphi 0, %s91
      %s108 = sphi 0, %s92
      %s112 = sphi 0, %s112
      %s114 = sphi 0, %s112
      %s115 = sphi 0, %s114
      %s129 = sphi 0, %s115
      %s133 = sphi 0, %s133
      %s135 = sphi 0, %s133
      %s136 = sphi 0, %s135
      %s150 = sphi 0, %s136
      %s156 = sphi 0, %s158
      %s159 = sphi 0, %s156
      %s160 = sphi 0, %s159
      %s176 = sphi 0, %s160
    $region4: #{tpu_custom_call.1} parent=1 // loop_header_branch
      %27 = sbr.rel (%p25) target = $region8
    $region5: #{tpu_custom_call.1} parent=1 // loop_body
      %s29 = ssub.s32 %s24, 1
      %s30 = ssub.s32 %s24, 2
      %s37 = sadd.s32 1, %s32
      %p38 = scmp.ge.s32.totalorder %s37, 1
      %s39 = scalar_select %p38, 0, %s37
      %s40 = sadd.s32 1, %s31
      %s41 = scalar_select %p38, %s40, %s31
      %p42 = scmp.ge.s32.totalorder %s41, 2
      %s43 = scalar_select %p42, 0, %s41
      %s44 = sld [smem:[#allocation5 + %s31]]
      %p45 = scmp.lt.s32.totalorder %s32, %s44
      %s46 = scalar_select %p45, %s32, %s44
      %s47 = sld [smem:[#allocation5 + %s43]]
      %p48 = scmp.lt.s32.totalorder %s39, %s47
      %s49 = scalar_select %p48, %s39, %s47
      %s50 = ssub.s32 %s31, %s43
      %s51 = ssub.s32 %s46, %s49
      %s52 = sor.u32 %s50, %s51
      %p53 = scmp.eq.s32.totalorder %s52, 0
      %s55 = sadd.s32 %s54, 1
      %s56 = scalar_select %p53, %s54, %s55
      %p59 = pneg %p53
      %p60 = scmp.eq.s32.totalorder %s24, 1
      %p61 = por %p59, %p60
      %p62 = scmp.ne.s32.totalorder %s54, %s57
      %p63 = scmp.eq.s32.totalorder %s24, 0
      %p64 = por %p62, %p63
      %p65 = scmp.ne.s32.totalorder %s54, %s57
      %p66 = scmp.eq.s32.totalorder %s29, 1
      %p67 = por %p65, %p66
      %p68 = scmp.ne.s32.totalorder %s57, %s58
      %p69 = scmp.eq.s32.totalorder %s29, 0
      %p70 = por %p68, %p69
      %p71 = scmp.ne.s32.totalorder %s57, %s58
      %p72 = scmp.eq.s32.totalorder %s30, 1
      %p73 = por %p71, %p72
      %p75 = scmp.ne.s32.totalorder %s58, %s74
      %p76 = scmp.eq.s32.totalorder %s30, 0
      %p77 = por %p75, %p76
      %s78 = sld [smem:[#allocation5 + %s31]]
      %p79 = scmp.lt.s32.totalorder %s32, %s78
      %s80 = scalar_select %p79, %s32, %s78
      %s81 = sld [smem:[#allocation5 + %s43]]
      %p82 = scmp.lt.s32.totalorder %s39, %s81
      %s83 = scalar_select %p82, %s39, %s81
      %s84 = ssub.s32 %s31, %s43
      %s85 = ssub.s32 %s80, %s83
      %s86 = sor.u32 %s84, %s85
      %p87 = scmp.eq.s32.totalorder %s86, 0
      %s89 = sadd.s32 %s88, 1
      %s90 = scalar_select %p87, %s88, %s89
      %p93 = pneg %p87
      %p94 = scmp.eq.s32.totalorder %s24, 1
      %p95 = por %p93, %p94
      %p96 = scmp.ne.s32.totalorder %s88, %s91
      %p97 = scmp.eq.s32.totalorder %s24, 0
      %p98 = por %p96, %p97
      %p99 = scmp.ne.s32.totalorder %s88, %s91
      %p100 = scmp.eq.s32.totalorder %s29, 1
      %p101 = por %p99, %p100
      %p102 = scmp.ne.s32.totalorder %s91, %s92
      %p103 = scmp.eq.s32.totalorder %s29, 0
      %p104 = por %p102, %p103
      %p105 = scmp.ne.s32.totalorder %s91, %s92
      %p106 = scmp.eq.s32.totalorder %s30, 1
      %p107 = por %p105, %p106
      %p109 = scmp.ne.s32.totalorder %s92, %s108
      %p110 = scmp.eq.s32.totalorder %s30, 0
      %p111 = por %p109, %p110
      %s113 = sadd.s32 %s112, 1
      %p116 = scmp.eq.s32.totalorder %s24, 1
      %p117 = scmp.ne.s32.totalorder %s112, %s114
      %p118 = scmp.eq.s32.totalorder %s24, 0
      %p119 = por %p117, %p118
      %p120 = scmp.ne.s32.totalorder %s112, %s114
      %p121 = scmp.eq.s32.totalorder %s29, 1
      %p122 = por %p120, %p121
      %p123 = scmp.ne.s32.totalorder %s114, %s115
      %p124 = scmp.eq.s32.totalorder %s29, 0
      %p125 = por %p123, %p124
      %p126 = scmp.ne.s32.totalorder %s114, %s115
      %p127 = scmp.eq.s32.totalorder %s30, 1
      %p128 = por %p126, %p127
      %p130 = scmp.ne.s32.totalorder %s115, %s129
      %p131 = scmp.eq.s32.totalorder %s30, 0
      %p132 = por %p130, %p131
      %s134 = sadd.s32 %s133, 1
      %p137 = scmp.eq.s32.totalorder %s24, 1
      %p138 = scmp.ne.s32.totalorder %s133, %s135
      %p139 = scmp.eq.s32.totalorder %s24, 0
      %p140 = por %p138, %p139
      %p141 = scmp.ne.s32.totalorder %s133, %s135
      %p142 = scmp.eq.s32.totalorder %s29, 1
      %p143 = por %p141, %p142
      %p144 = scmp.ne.s32.totalorder %s135, %s136
      %p145 = scmp.eq.s32.totalorder %s29, 0
      %p146 = por %p144, %p145
      %p147 = scmp.ne.s32.totalorder %s135, %s136
      %p148 = scmp.eq.s32.totalorder %s30, 1
      %p149 = por %p147, %p148
      %p151 = scmp.ne.s32.totalorder %s136, %s150
      %p152 = scmp.eq.s32.totalorder %s30, 0
      %p153 = por %p151, %p152
      %s154 = ssub.s32 %s31, %s43
      %p155 = scmp.eq.s32.totalorder %s154, 0
      %s157 = sadd.s32 %s156, 1
      %s158 = scalar_select %p155, %s156, %s157
      %p161 = pneg %p155
      %p162 = scmp.eq.s32.totalorder %s24, 1
      %p163 = por %p161, %p162
      %p164 = scmp.ne.s32.totalorder %s156, %s159
      %p165 = scmp.eq.s32.totalorder %s24, 0
      %p166 = por %p164, %p165
      %p167 = scmp.ne.s32.totalorder %s156, %s159
      %p168 = scmp.eq.s32.totalorder %s29, 1
      %p169 = por %p167, %p168
      %p170 = scmp.ne.s32.totalorder %s159, %s160
      %p171 = scmp.eq.s32.totalorder %s29, 0
      %p172 = por %p170, %p171
      %p173 = scmp.ne.s32.totalorder %s159, %s160
      %p174 = scmp.eq.s32.totalorder %s30, 1
      %p175 = por %p173, %p174
      %p177 = scmp.ne.s32.totalorder %s160, %s176
      %p178 = scmp.eq.s32.totalorder %s30, 0
      %p179 = por %p177, %p178
      %p180 = scmp.le.s32.totalorder 1, %s24
      %p181 = scmp.lt.s32.totalorder %s24, 3
      %p182 = pnand %p180, %p181
      %p183 = pneg %p182
      // Predicated region
      $region9: #{tpu_custom_call.1} parent=5 // pred_check
        _
      $region10: #{tpu_custom_call.1} parent=5 // pred_check_branch
        %185 = sbr.rel (%p182) target = $region12
      $region11: #{tpu_custom_call.1} parent=5 // pred_region
        %s186 = ssub.s32 %s24, 1
        // Predicated region
        $region13: #{tpu_custom_call.1} parent=11 // pred_check
          %p187 = pneg %p125
        $region14: #{tpu_custom_call.1} parent=11 // pred_check_branch
          %189 = sbr.rel (%p187) target = $region16
        $region15: #{tpu_custom_call.1} parent=11 // pred_region
          %s191 = ssub.s32 512, 512
          %192 = vsyncadd [#allocation10], %s191
          %s193 = sshll.u32 [#allocation9], 4
          %s194 = int_to_ptr.vmem [resolvable:$true] %s193
          %199 = dma.hbm_to_vmem [thread:$0]  %s3, 512, %s194, [#allocation10], 128, 128, 8
        $region16: #{tpu_custom_call.1} parent=11 // pred_fallthru
          _
        // Predicated region
        $region17: #{tpu_custom_call.1} parent=11 // pred_check
          %p200 = pneg %p146
        $region18: #{tpu_custom_call.1} parent=11 // pred_check_branch
          %202 = sbr.rel (%p200) target = $region20
        $region19: #{tpu_custom_call.1} parent=11 // pred_region
          _
        $region20: #{tpu_custom_call.1} parent=11 // pred_fallthru
          _
      $region12: #{tpu_custom_call.1} parent=5 // pred_fallthru
        _
      %p203 = scmp.lt.s32.totalorder %s24, 2
      // Predicated region
      $region21: #{tpu_custom_call.1} parent=5 // pred_check
        %p204 = pneg %p203
      $region22: #{tpu_custom_call.1} parent=5 // pred_check_branch
        %206 = sbr.rel (%p204) target = $region24
      $region23: #{tpu_custom_call.1} parent=5 // pred_region
        // Predicated region
        $region25: #{tpu_custom_call.1} parent=23 // pred_check
          %p207 = pneg %p64
        $region26: #{tpu_custom_call.1} parent=23 // pred_check_branch
          %209 = sbr.rel (%p207) target = $region28
        $region27: #{tpu_custom_call.1} parent=23 // pred_region
          %s210 = sld [smem:[#allocation5 + %s31]]
          %p211 = scmp.lt.s32.totalorder %s32, %s210
          %s212 = scalar_select %p211, %s32, %s210
          %p213 = scmp.lt.s32.totalorder %s31, 1
          %s214 = scalar_select %p213, %s31, 1
          %p215 = scmp.lt.s32.totalorder %s212, 0
          %s216 = scalar_select %p215, %s212, 0
          %s217 = sadd.s32 %s216, %s214
          %s218 = scalar_lea.vmem %s1, %s217
          %s219 = sld [smem:[#allocation5 + %s31]]
          %p220 = scmp.lt.s32.totalorder %s32, %s219
          %s221 = scalar_select %p220, %s32, %s219
        $region28: #{tpu_custom_call.1} parent=23 // pred_fallthru
          _
        // Predicated region
        $region29: #{tpu_custom_call.1} parent=23 // pred_check
          %p222 = pneg %p98
        $region30: #{tpu_custom_call.1} parent=23 // pred_check_branch
          %224 = sbr.rel (%p222) target = $region32
        $region31: #{tpu_custom_call.1} parent=23 // pred_region
          %s225 = sand.u32 %s88, 1
          %s226 = scalar_lea.sflag [#allocation7], %s225
          %s227 = sand.u32 %s88, 1
          %s228 = smul.addr %s227, 4
          %s229 = scalar_lea.vmem [#allocation6], %s228
          %s230 = sld [smem:[#allocation5 + %s31]]
          %p231 = scmp.lt.s32.totalorder %s32, %s230
          %s232 = scalar_select %p231, %s32, %s230
          %s234 = ssub.s32 64, 64
          %235 = vsyncadd %s226, %s234
          %s236 = sadd.s32 %s232, %s31
          %s237 = smul.addr %s236, 64
          %s238 = scalar_lea.hbm %s2, %s237
          %s240 = sshll.u32 %s229, 4
          %s241 = int_to_ptr.vmem [resolvable:$true] %s240
          %243 = dma.hbm_to_vmem [thread:$0]  %s238, 64, %s241, %s226
        $region32: #{tpu_custom_call.1} parent=23 // pred_fallthru
          _
      $region24: #{tpu_custom_call.1} parent=5 // pred_fallthru
        _
      %p244 = scmp.le.s32.totalorder 1, %s24
      %p245 = scmp.lt.s32.totalorder %s24, 3
      %p246 = pnand %p244, %p245
      %p247 = pneg %p246
      // Predicated region
      $region33: #{tpu_custom_call.1} parent=5 // pred_check
        _
      $region34: #{tpu_custom_call.1} parent=5 // pred_check_branch
        %249 = sbr.rel (%p246) target = $region36
      $region35: #{tpu_custom_call.1} parent=5 // pred_region
        %s250 = ssub.s32 %s24, 1
        %s251 = sand.u32 %s91, 1
        %s252 = scalar_lea.sflag [#allocation7], %s251
        %s253 = sand.u32 %s91, 1
        %s254 = smul.addr %s253, 4
        %s255 = scalar_lea.vmem [#allocation6], %s254
        // Predicated region
        $region37: #{tpu_custom_call.1} parent=35 // pred_check
          %p256 = pneg %p104
        $region38: #{tpu_custom_call.1} parent=35 // pred_check_branch
          %258 = sbr.rel (%p256) target = $region40
        $region39: #{tpu_custom_call.1} parent=35 // pred_region
          %259 = dma.done %s252, 64
        $region40: #{tpu_custom_call.1} parent=35 // pred_fallthru
          _
        // Predicated region
        $region41: #{tpu_custom_call.1} parent=35 // pred_check
          %p260 = pneg %p125
        $region42: #{tpu_custom_call.1} parent=35 // pred_check_branch
          %262 = sbr.rel (%p260) target = $region44
        $region43: #{tpu_custom_call.1} parent=35 // pred_region
          %263 = dma.done [#allocation10], 512
        $region44: #{tpu_custom_call.1} parent=35 // pred_fallthru
          _
        %s264 = sld [smem:[#allocation5 + %s33]]
        %p265 = scmp.lt.s32.totalorder %s34, %s264
        %s266 = scalar_select %p265, %s34, %s264
        %p267 = scmp.lt.s32.totalorder %s33, 1
        %s268 = scalar_select %p267, %s33, 1
        %p269 = scmp.lt.s32.totalorder %s266, 0
        %s270 = scalar_select %p269, %s266, 0
        %s271 = sadd.s32 %s270, %s268
        %s272 = scalar_lea.vmem %s1, %s271
        %p273 = pneg %p70
        %p274 = pneg %p67
        %s275 = sand.u32 %s91, 1
        %s276 = scalar_lea.sflag [#allocation7], %s275
        %s277 = sand.u32 %s91, 1
        %s278 = smul.addr %s277, 4
        %s279 = scalar_lea.vmem [#allocation6], %s278
        %p280 = pneg %p104
        %p281 = pneg %p101
        %p282 = pneg %p125
        %p283 = pneg %p122
        %p284 = pneg %p146
        %p285 = pneg %p143
        %p286 = pneg %p172
        %p287 = pneg %p169
        %s288 = sand.u32 %s159, 1
        %s289 = scalar_lea.sflag [#allocation8], %s288
        %s290 = sand.u32 %s159, 1
        %s291 = scalar_lea.vmem [#allocation11], %s290
        %s292 = sld [smem:[#allocation5 + %s33]]
        %p293 = scmp.lt.s32.totalorder %s34, %s292
        %s294 = scalar_select %p293, %s34, %s292
        %p295 = scmp.lt.s32.totalorder %s33, 1
        %s296 = scalar_select %p295, %s33, 1
        %p297 = scmp.lt.s32.totalorder %s294, 0
        %s298 = scalar_select %p297, %s294, 0
        %s299 = sadd.s32 %s298, %s296
        %s300 = scalar_lea.vmem %s1, %s299
        %s301 = sld [smem:[#allocation5 + %s33]]
        %p302 = scmp.lt.s32.totalorder %s34, %s301
        %s303 = scalar_select %p302, %s34, %s301
        %s304 = sld [smem:[#allocation5 + %s33]]
        %p305 = scmp.lt.s32.totalorder %s34, %s304
        %s306 = scalar_select %p305, %s34, %s304
        %p308 = scmp.eq.s32.totalorder %s34, 0
        // Predicated region
        $region45: #{tpu_custom_call.1} parent=35 // pred_check
          %p309 = pneg %p308
        $region46: #{tpu_custom_call.1} parent=35 // pred_check_branch
          %311 = sbr.rel (%p309) target = $region48
        $region47: #{tpu_custom_call.1} parent=35 // pred_region
          %vm312 = vcmask 253952
          %313 = vst.msk [vmem:[#allocation2] sm:$0x1] %vm312, 0.0
          %vm314 = vcmask 0
          %315 = vst.msk [vmem:[#allocation3] sm:$0x1] %vm314, 0.0
        $region48: #{tpu_custom_call.1} parent=35 // pred_fallthru
          _
        %s316 = sld [smem:[#allocation5 + %s33]]
        %p317 = scmp.le.s32.totalorder %s34, %s316
        // Predicated region
        $region49: #{tpu_custom_call.1} parent=35 // pred_check
          %p318 = pneg %p317
        $region50: #{tpu_custom_call.1} parent=35 // pred_check_branch
          %320 = sbr.rel (%p318) target = $region52
        $region51: #{tpu_custom_call.1} parent=35 // pred_region
          %v321 = vld [vmem:[%s300] sm:$0x1]
          %v322 = vld [vmem:[%s255] sm:$0xf]
          %v323 = vld [vmem:[#allocation2] sm:$0x1]
          %vm324 = vcmask 64512
          %v326 = vsel %vm324, %v321, 0
          %vm328 = vcmask 1043456
          %v330 = vsel %vm328, %v322, 0
          %332 = vmatprep.subr.bf16.mxu0 0
          %333 = vmatpush1.bf16.msra.mxu0 0
          %334 = vmatprep.subr.bf16.mxu0 0
          %335 = vmatpush1.bf16.msra.mxu0 0
          %336 = vmatprep.subr.bf16.mxu0 0
          %337 = vmatpush1.bf16.msra.mxu0 0
          %338 = vmatprep.subr.bf16.mxu0 0
          %339 = vmatpush1.bf16.msra.mxu0 0
          %340 = vmatprep.subr.bf16.mxu0 0
          %341 = vmatpush1.bf16.msra.mxu0 0
          %342 = vmatprep.subr.bf16.mxu0 0
          %343 = vmatpush1.bf16.msra.mxu0 0
          %344 = vmatprep.subr.bf16.mxu0 0
          %345 = vmatpush1.bf16.msra.mxu0 0
          %346 = vmatprep.subr.bf16.mxu0 0
          %347 = vmatpush1.bf16.msra.mxu0 %v330
          %348 = vmatprep.subr.bf16.mxu0 0
          %349 = vmatpush2.bf16.msra.mxu0 0
          %350 = vmatprep.subr.bf16.mxu0 0
          %351 = vmatpush2.bf16.msra.mxu0 0
          %352 = vmatprep.subr.bf16.mxu0 0
          %353 = vmatpush2.bf16.msra.mxu0 0
          %354 = vmatprep.subr.bf16.mxu0 0
          %355 = vmatpush2.bf16.msra.mxu0 0
          %356 = vmatprep.subr.bf16.mxu0 0
          %357 = vmatpush2.bf16.msra.mxu0 0
          %358 = vmatprep.subr.bf16.mxu0 0
          %359 = vmatpush2.bf16.msra.mxu0 0
          %360 = vmatprep.subr.bf16.mxu0 0
          %361 = vmatpush2.bf16.msra.mxu0 0
          %362 = vmatprep.subr.bf16.mxu0 0
          %363 = vmatpush2.bf16.msra.mxu0 0
          %364 = vmatprep.mubr.bf16.mxu0 0
          %365 = vmatmul.mubr.bf16.gmra.mxu0 %v326
          %v366 = vpop.f32.mrf.mxu0
          %v367 = vadd.f32 0.0, %v366
          %v368 = vpop.f32.mrf.mxu0
          %v369 = vpop.f32.mrf.mxu0
          %v370 = vpop.f32.mrf.mxu0
          %371 = vdwg.mxu0
          %v372 = vadd.f32 %v323, %v367
          %vm373 = vcmask 253952
          %374 = vst.msk [vmem:[#allocation2] sm:$0x1] %vm373, %v372
          %v375 = vld [vmem:[#allocation3] sm:$0x1]
          %v376 = vunpack.c.l.bf16 %v321
          %vm377 = vcmask 57344
          %v378 = vsel %vm377, %v376, 0.0
          %379 = vadd.xlane.f32.xlu0 %v378
          %v380 = vpop.xlane.xlu0 %379
          %v381 = vadd.f32 %v375, %v380
          %vm382 = vcmask 0
          %383 = vst.msk [vmem:[#allocation3] sm:$0x1] %vm382, %v381
        $region52: #{tpu_custom_call.1} parent=35 // pred_fallthru
          _
        // Predicated region
        $region53: #{tpu_custom_call.1} parent=35 // pred_check
          %p384 = pneg %p308
        $region54: #{tpu_custom_call.1} parent=35 // pred_check_branch
          %386 = sbr.rel (%p384) target = $region56
        $region55: #{tpu_custom_call.1} parent=35 // pred_region
          %v387 = vld [vmem:[#allocation2] sm:$0x1]
          %v388 = vadd.f32 %v387, 0.0
          %v389 = vld [vmem:[#allocation3] sm:$0x1]
          %v390 = vadd.f32 %v389, 0.0
          %v391 = vadd.f32 %v390, 1e-10
          %v392 = vrcp.pop %v391
          %v393 = vld [vmem:[#allocation9] sm:$0xff]
          %v394 = vld [vmem:[#allocation9 + $0x8] sm:$0xff]
          %v395 = vld [vmem:[#allocation9 + $0x10] sm:$0xff]
          %v396 = vld [vmem:[#allocation9 + $0x18] sm:$0xff]
          %vm397 = vcmask 261120
          %v399 = vsel %vm397, %v388, 0
          %401 = vmatprep.subr.mxu0 0.0
          %402 = vmatpush1.msra.mxu0 0.0
          %403 = vmatprep.subr.mxu0 0.0
          %404 = vmatpush1.msra.mxu0 0.0
          %405 = vmatprep.subr.mxu0 0.0
          %406 = vmatpush1.msra.mxu0 0.0
          %407 = vmatprep.subr.mxu0 0.0
          %408 = vmatpush1.msra.mxu0 0.0
          %409 = vmatprep.subr.mxu0 0.0
          %410 = vmatpush1.msra.mxu0 0.0
          %411 = vmatprep.subr.mxu0 0.0
          %412 = vmatpush1.msra.mxu0 0.0
          %413 = vmatprep.subr.mxu0 0.0
          %414 = vmatpush1.msra.mxu0 0.0
          %415 = vmatprep.subr.mxu0 0.0
          %416 = vmatpush1.msra.mxu0 0.0
          %417 = vmatprep.subr.mxu0 0.0
          %418 = vmatpush1.msra.mxu0 0.0
          %419 = vmatprep.subr.mxu0 0.0
          %420 = vmatpush1.msra.mxu0 0.0
          %421 = vmatprep.subr.mxu0 0.0
          %422 = vmatpush1.msra.mxu0 0.0
          %423 = vmatprep.subr.mxu0 0.0
          %424 = vmatpush1.msra.mxu0 0.0
          %425 = vmatprep.subr.mxu0 0.0
          %426 = vmatpush1.msra.mxu0 %v396
          %427 = vmatprep.subr.mxu0 0.0
          %428 = vmatpush1.msra.mxu0 %v395
          %429 = vmatprep.subr.mxu0 0.0
          %430 = vmatpush1.msra.mxu0 %v394
          %431 = vmatprep.subr.mxu0 0.0
          %432 = vmatpush1.msra.mxu0 %v393
          %433 = vmatprep.subr.mxu0 0.0
          %434 = vmatpush2.msra.mxu0 0.0
          %435 = vmatprep.subr.mxu0 0.0
          %436 = vmatpush2.msra.mxu0 0.0
          %437 = vmatprep.subr.mxu0 0.0
          %438 = vmatpush2.msra.mxu0 0.0
          %439 = vmatprep.subr.mxu0 0.0
          %440 = vmatpush2.msra.mxu0 0.0
          %441 = vmatprep.subr.mxu0 0.0
          %442 = vmatpush2.msra.mxu0 0.0
          %443 = vmatprep.subr.mxu0 0.0
          %444 = vmatpush2.msra.mxu0 0.0
          %445 = vmatprep.subr.mxu0 0.0
          %446 = vmatpush2.msra.mxu0 0.0
          %447 = vmatprep.subr.mxu0 0.0
          %448 = vmatpush2.msra.mxu0 0.0
          %449 = vmatprep.subr.mxu0 0.0
          %450 = vmatpush2.msra.mxu0 0.0
          %451 = vmatprep.subr.mxu0 0.0
          %452 = vmatpush2.msra.mxu0 0.0
          %453 = vmatprep.subr.mxu0 0.0
          %454 = vmatpush2.msra.mxu0 0.0
          %455 = vmatprep.subr.mxu0 0.0
          %456 = vmatpush2.msra.mxu0 0.0
          %457 = vmatprep.subr.mxu0 0.0
          %458 = vmatpush2.msra.mxu0 0.0
          %459 = vmatprep.subr.mxu0 0.0
          %460 = vmatpush2.msra.mxu0 0.0
          %461 = vmatprep.subr.mxu0 0.0
          %462 = vmatpush2.msra.mxu0 0.0
          %463 = vmatprep.subr.mxu0 0.0
          %464 = vmatpush2.msra.mxu0 0.0
          %465 = vmatprep.mubr.f32.mxu0 0.0
          %466 = vmatmul.mubr.f32.gmra.mxu0 %v399
          %v467 = vpop.f32.mrf.mxu0
          %v468 = vadd.f32 0.0, %v467
          %v469 = vpop.f32.mrf.mxu0
          %470 = vdwg.mxu0
          %472 = vset.pattern.permute.xlu0 0
          %473 = vperm.xlu0 %472, %v392
          %v474 = vpop.permute.xlu0 %473
          %v476 = vlaneseq
          %v477 = vshrl.u32 %v476, 7
          %v478 = vsub.s32 0, %v477
          %v479 = vrot.slane %v474, %v478
          %v480 = vmul.f32 %v468, %v479
          %v481 = vld [vmem:[%s4] sm:$0x1]
          %v482 = vadd.f32 %v480, %v481
          %vm483 = vcmask 1040384
          %v484 = vsel %vm483, %v482, -inf
          %485 = vmax.xlane.f32.xlu0 %v484
          %v486 = vpop.xlane.xlu0 %485
          %v487 = vsub.f32 %v482, %v486
          %v488 = vmul.f32 %v487, 1.442695
          %v489 = vpow.pop %v488
          %v490 = vsel %vm483, %v489, 0.0
          %491 = vadd.xlane.f32.xlu0 %v490
          %v492 = vpop.xlane.xlu0 %491
          %v493 = vlog2.pop %v492
          %v494 = vmul.f32 %v493, 0.6931472
          %v495 = vsub.f32 %v487, %v494
          %496 = vst [vmem:[%s291] sm:$0x1] %v495
        $region56: #{tpu_custom_call.1} parent=35 // pred_fallthru
          _
        %s497 = sand.u32 %s159, 1
        %s498 = scalar_lea.sflag [#allocation8], %s497
        %s499 = sand.u32 %s159, 1
        %s500 = scalar_lea.vmem [#allocation11], %s499
        // Predicated region
        $region57: #{tpu_custom_call.1} parent=35 // pred_check
          %p501 = pneg %p169
        $region58: #{tpu_custom_call.1} parent=35 // pred_check_branch
          %503 = sbr.rel (%p501) target = $region60
        $region59: #{tpu_custom_call.1} parent=35 // pred_region
          %s505 = ssub.s32 16, 16
          %506 = vsyncadd %s498, %s505
          %s507 = smul.addr %s33, 16
          %s508 = scalar_lea.hbm %s5, %s507
          %s510 = sshll.u32 %s500, 4
          %s511 = int_to_ptr.vmem [resolvable:$true] %s510
          %513 = dma.vmem_to_hbm [thread:$0]  %s511, 16, %s508, %s498
        $region60: #{tpu_custom_call.1} parent=35 // pred_fallthru
          _
      $region36: #{tpu_custom_call.1} parent=5 // pred_fallthru
        _
      %p514 = scmp.le.s32.totalorder 2, %s24
      // Predicated region
      $region61: #{tpu_custom_call.1} parent=5 // pred_check
        %p515 = pneg %p514
      $region62: #{tpu_custom_call.1} parent=5 // pred_check_branch
        %517 = sbr.rel (%p515) target = $region64
      $region63: #{tpu_custom_call.1} parent=5 // pred_region
        %s518 = ssub.s32 %s24, 2
        // Predicated region
        $region65: #{tpu_custom_call.1} parent=63 // pred_check
          %p519 = pneg %p175
        $region66: #{tpu_custom_call.1} parent=63 // pred_check_branch
          %521 = sbr.rel (%p519) target = $region68
        $region67: #{tpu_custom_call.1} parent=63 // pred_region
          %s522 = sand.u32 %s160, 1
          %s523 = scalar_lea.sflag [#allocation8], %s522
          %s524 = sand.u32 %s160, 1
          %s525 = scalar_lea.vmem [#allocation11], %s524
          %526 = dma.done %s523, 16
        $region68: #{tpu_custom_call.1} parent=63 // pred_fallthru
          _
      $region64: #{tpu_custom_call.1} parent=5 // pred_fallthru
        _
    $region6: #{tpu_custom_call.1} parent=1 // loop_footer
      %s28 = sadd.s32 1, %s24
    $region7: #{tpu_custom_call.1} parent=1 // loop_footer_branch
      %23 = sbr.rel target = $region3
    $region8: #{tpu_custom_call.1} parent=1 // loop_exit
      _
    %527 = vsyncpa [#allocation7], 1
    %s528 = scalar_lea.sflag [#allocation7], 1
    %529 = vsyncpa %s528, 1
    %530 = vsyncpa [#allocation10], 1
    %531 = vsyncpa [#allocation8], 1
    %s532 = scalar_lea.sflag [#allocation8], 1
    %533 = vsyncpa %s532, 1

</llo_original>
